<compile_context>
chip_gen: v7x
topology: tpu7x:2x2x1
jax: 0.10.0
libtpu: 0.0.40
codegen_flags: <defaults>
</compile_context>

<pallas_src>
import functools

import jax
import jax.numpy as jnp
from jax.experimental import pallas as pl
from jax.experimental.pallas import tpu as pltpu  # noqa: F401  (TPU backend)

MXU_DTYPE = jnp.bfloat16  # matmul operand dtype; accumulation is always f32


# ---------------------------------------------------------------------------
# Fused kernel: embedding -> conv(+ReLU+maxpool, all filters) -> dropout -> FC
# ---------------------------------------------------------------------------
def textcnn_fused_kernel(ids_ref, embed_ref, wconv_ref, bconv_ref, rbits_ref,
                         wfc_ref, bfc_ref, out_ref, *,
                         batch, sentence_size, filters, num_filters,
                         drop_threshold, drop_scale):
    B = batch
    S = sentence_size
    fmin, fmax = min(filters), max(filters)
    P = S - fmin + 1                      # max #valid conv positions (filter fmin)
    BS = ids_ref.shape[0]                 # B * S_pad  (time axis padded to P+fmax-1)
    S_pad = BS // B
    V, E = embed_ref.shape
    NF = wconv_ref.shape[1]               # len(filters) * num_filters
    mxu_dtype = wconv_ref.dtype

    # ---- embedding lookup as one-hot matmul (MXU) --------------------------
    ids = ids_ref[...]                                             # (B*S_pad, 1) i32
    eq = ids == jax.lax.broadcasted_iota(jnp.int32, (BS, V), 1)    # (BS, V) bool
    onehot = jnp.where(eq, 1.0, 0.0).astype(mxu_dtype)
    x = jnp.dot(onehot, embed_ref[...],
                preferred_element_type=jnp.float32)                # (BS, E) f32
    x = x.reshape(B, S_pad, E)                                     # (B, S_pad, E)

    # ---- im2col: all filters / all taps -> ONE matmul ----------------------
    win = jnp.concatenate([x[:, r:r + P, :] for r in range(fmax)], axis=2)
    win = win.reshape(B * P, fmax * E).astype(mxu_dtype)           # (B*P, fmax*E)
    conv = jnp.dot(win, wconv_ref[...],
                   preferred_element_type=jnp.float32)             # (B*P, NF) f32
    conv = conv.reshape(B, P, NF) + bconv_ref[...][None, :, :]     # + bias (f32)
    conv = jnp.maximum(conv, 0.0)                                  # ReLU (f32)

    # ---- mask positions past each filter's valid range, then max-pool ------
    pos = jax.lax.broadcasted_iota(jnp.int32, (B, P, NF), 1)
    col = jax.lax.broadcasted_iota(jnp.int32, (B, P, NF), 2)
    valid = None
    for gi, f in enumerate(filters):
        in_group = (col >= gi * num_filters) & (col < (gi + 1) * num_filters)
        cond = in_group & (pos < (S - f + 1))
        valid = cond if valid is None else (valid | cond)
    conv = jnp.where(valid, conv, -jnp.inf)
    feat = jnp.max(conv, axis=1)                                   # (B, NF) f32

    # ---- dropout: raw uint32 bits vs integer threshold ---------------------
    keep = rbits_ref[...] >= jnp.uint32(drop_threshold)            # drop prob = p
    feat = jnp.where(keep, feat * jnp.float32(drop_scale), 0.0)

    # ---- final linear layer (output padded to 128 lanes) -------------------
    logits = jnp.dot(feat.astype(mxu_dtype), wfc_ref[...],
                     preferred_element_type=jnp.float32) + bfc_ref[...]
    out_ref[...] = logits


# ---------------------------------------------------------------------------
# Wrapper: parameter packing + single pallas_call
# ---------------------------------------------------------------------------
def textcnn_forward(token_ids, params, dropout_key, *, filters, num_filters,
                    num_classes, dropout_p, mxu_dtype=MXU_DTYPE):
    B, S = token_ids.shape
    fmin, fmax = min(filters), max(filters)
    P = S - fmin + 1
    S_pad = P + fmax - 1                  # padded time axis; pad content is never
    V, E = params["embed"].shape          # read with a nonzero, unmasked weight
    NF = num_filters * len(filters)
    C_PAD = 128                           # lane-dense output slab (sliced below)

    assert 0.0 <= dropout_p < 1.0, "dropout_p must be in [0, 1)"
    drop_threshold = min(int(round(dropout_p * 2 ** 32)), 2 ** 32 - 1)
    drop_scale = 1.0 / (1.0 - dropout_p)

    # --- pack parameters (would normally be hoisted out of the step fn) -----
    ids_pad = jnp.pad(token_ids.astype(jnp.int32), ((0, 0), (0, S_pad - S)))
    ids2 = ids_pad.reshape(B * S_pad, 1)

    embed = params["embed"].astype(mxu_dtype)

    wblocks, bblocks = [], []
    for f in filters:
        w = params[f"conv_w_{f}"]                               # (f, E, F)
        w = jnp.concatenate(
            [w, jnp.zeros((fmax - f, E, num_filters), w.dtype)], axis=0)
        wblocks.append(w.reshape(fmax * E, num_filters))
        bblocks.append(params[f"conv_b_{f}"].reshape(1, num_filters))
    w_conv = jnp.concatenate(wblocks, axis=1).astype(mxu_dtype)  # (fmax*E, NF)
    b_conv = jnp.concatenate(bblocks, axis=1).astype(jnp.float32)  # (1, NF)

    w_fc = jnp.zeros((NF, C_PAD), jnp.float32)
    w_fc = w_fc.at[:, :num_classes].set(params["fc_w_t"]).astype(mxu_dtype)
    b_fc = jnp.zeros((1, C_PAD), jnp.float32)
    b_fc = b_fc.at[:, :num_classes].set(params["fc_b"])

    rbits = jax.random.bits(dropout_key, (B, NF), dtype=jnp.uint32)

    kernel = functools.partial(
        textcnn_fused_kernel,
        batch=B, sentence_size=S, filters=tuple(filters),
        num_filters=num_filters, drop_threshold=drop_threshold,
        drop_scale=drop_scale)

    out_padded = pl.pallas_call(
        kernel,
        out_shape=jax.ShapeDtypeStruct((B, C_PAD), jnp.float32),
        grid=(1,),
        in_specs=[
            pl.BlockSpec((B * S_pad, 1), lambda i: (0, 0)),      # token ids
            pl.BlockSpec((V, E), lambda i: (0, 0)),              # embedding table
            pl.BlockSpec((fmax * E, NF), lambda i: (0, 0)),      # packed conv W
            pl.BlockSpec((1, NF), lambda i: (0, 0)),             # packed conv b
            pl.BlockSpec((B, NF), lambda i: (0, 0)),             # dropout bits
            pl.BlockSpec((NF, C_PAD), lambda i: (0, 0)),         # fc W (padded)
            pl.BlockSpec((1, C_PAD), lambda i: (0, 0)),          # fc b (padded)
        ],
        out_specs=pl.BlockSpec((B, C_PAD), lambda i: (0, 0)),
    )(ids2, embed, w_conv, b_conv, rbits, w_fc, b_fc)

    return out_padded[:, :num_classes]


# ---------------------------------------------------------------------------
# Demo
# ---------------------------------------------------------------------------
if __name__ == "__main__":
    vocab, E, S, B = 50, 32, 16, 2
    num_filters = 16
    filters = (3, 4, 5)
    num_classes = 3
    dropout_p = 0.5

    key = jax.random.PRNGKey(0)
    k_emb, k_fc, kc3, kc4, kc5, kx, kdrop = jax.random.split(key, 7)
    conv_keys = {3: kc3, 4: kc4, 5: kc5}

    params = {"embed": jax.random.normal(k_emb, (vocab, E), jnp.float32)}
    for f in filters:
        # PyTorch init parity: uniform(-0.01, 0.01) conv weights, zero biases.
        params[f"conv_w_{f}"] = jax.random.uniform(
            conv_keys[f], (f, E, num_filters), jnp.float32, -0.01, 0.01)
        params[f"conv_b_{f}"] = jnp.zeros((1, num_filters), jnp.float32)
    # Module init of fc_w is all-zeros (output trivially zero); use small random
    # values so the demo output is nontrivial.
    params["fc_w_t"] = (
        jax.random.normal(k_fc, (len(filters) * num_filters, num_classes),
                          jnp.float32) * 0.1)
    params["fc_b"] = jnp.zeros((1, num_classes), jnp.float32)

    token_ids = jax.random.randint(kx, (B, S), 0, vocab, dtype=jnp.int32)

    out = textcnn_forward(
        token_ids, params, kdrop, filters=filters, num_filters=num_filters,
        num_classes=num_classes, dropout_p=dropout_p)
    jax.block_until_ready(out)
    assert out.shape == (B, num_classes), out.shape
    assert out.dtype == jnp.float32
    print("KERNEL_OK")
</pallas_src>

<mosaic_0001>
module attributes {stable_mosaic.version = 11 : i64} {
  func.func @textcnn_fused_kernel(%arg0: i32, %arg1: memref<36x1xi32, #tpu.memory_space<vmem>>, %arg2: memref<50x32xbf16, #tpu.memory_space<vmem>>, %arg3: memref<160x48xbf16, #tpu.memory_space<vmem>>, %arg4: memref<1x48xf32, #tpu.memory_space<vmem>>, %arg5: memref<2x48xi32, #tpu.memory_space<vmem>>, %arg6: memref<48x128xbf16, #tpu.memory_space<vmem>>, %arg7: memref<1x128xf32, #tpu.memory_space<vmem>>, %arg8: memref<2x128xf32, #tpu.memory_space<vmem>>) attributes {dimension_semantics = [#tpu.dimension_semantics<arbitrary>], iteration_bounds = array<i64: 1>, scalar_prefetch = 0 : i64, scratch_operands = 0 : i64, tpu.core_type = #tpu.core_type<tc>, window_params = [{pipeline_mode = #tpu.pipeline_mode<synchronous>, transform_indices = @transform_0, window_bounds = array<i64: 36, 1>}, {pipeline_mode = #tpu.pipeline_mode<synchronous>, transform_indices = @transform_1, window_bounds = array<i64: 50, 32>}, {pipeline_mode = #tpu.pipeline_mode<synchronous>, transform_indices = @transform_2, window_bounds = array<i64: 160, 48>}, {pipeline_mode = #tpu.pipeline_mode<synchronous>, transform_indices = @transform_3, window_bounds = array<i64: 1, 48>}, {pipeline_mode = #tpu.pipeline_mode<synchronous>, transform_indices = @transform_4, window_bounds = array<i64: 2, 48>}, {pipeline_mode = #tpu.pipeline_mode<synchronous>, transform_indices = @transform_5, window_bounds = array<i64: 48, 128>}, {pipeline_mode = #tpu.pipeline_mode<synchronous>, transform_indices = @transform_6, window_bounds = array<i64: 1, 128>}, {pipeline_mode = #tpu.pipeline_mode<synchronous>, transform_indices = @transform_7, window_bounds = array<i64: 2, 128>}]} {
    %c0 = arith.constant 0 : index
    %c0_0 = arith.constant 0 : index
    %0 = vector.load %arg1[%c0, %c0_0] : memref<36x1xi32, #tpu.memory_space<vmem>>, vector<36x1xi32>
    %1 = tpu.iota {dimensions = array<i32: 1>} : vector<36x50xi32>
    %2 = vector.broadcast %0 : vector<36x1xi32> to vector<36x50xi32>
    %3 = arith.cmpi eq, %2, %1 : vector<36x50xi32>
    %cst = arith.constant 1.000000e+00 : f32
    %cst_1 = arith.constant 0.000000e+00 : f32
    %4 = vector.broadcast %cst : f32 to vector<36x50xf32>
    %5 = vector.broadcast %cst_1 : f32 to vector<36x50xf32>
    %6 = arith.select %3, %4, %5 : vector<36x50xi1>, vector<36x50xf32>
    %7 = arith.truncf %6 : vector<36x50xf32> to vector<36x50xbf16>
    %c0_2 = arith.constant 0 : index
    %c0_3 = arith.constant 0 : index
    %8 = vector.load %arg2[%c0_2, %c0_3] : memref<50x32xbf16, #tpu.memory_space<vmem>>, vector<50x32xbf16>
    %cst_4 = arith.constant dense<0.000000e+00> : vector<36x32xf32>
    %9 = tpu.matmul %7, %8, %cst_4 {dimension_numbers = #tpu.dot_dimension_numbers<[1], [0], [0], [1], [0, 0, 1, 1], [], []>} : vector<36x50xbf16>, vector<50x32xbf16>, vector<36x32xf32> -> vector<36x32xf32>
    %10 = vector.shape_cast %9 : vector<36x32xf32> to vector<2x18x32xf32>
    %11 = vector.extract_strided_slice %10 {offsets = [0, 0, 0], sizes = [2, 14, 32], strides = [1, 1, 1]} : vector<2x18x32xf32> to vector<2x14x32xf32>
    %12 = vector.extract_strided_slice %10 {offsets = [0, 1, 0], sizes = [2, 14, 32], strides = [1, 1, 1]} : vector<2x18x32xf32> to vector<2x14x32xf32>
    %13 = vector.extract_strided_slice %10 {offsets = [0, 2, 0], sizes = [2, 14, 32], strides = [1, 1, 1]} : vector<2x18x32xf32> to vector<2x14x32xf32>
    %14 = vector.extract_strided_slice %10 {offsets = [0, 3, 0], sizes = [2, 14, 32], strides = [1, 1, 1]} : vector<2x18x32xf32> to vector<2x14x32xf32>
    %15 = vector.extract_strided_slice %10 {offsets = [0, 4, 0], sizes = [2, 14, 32], strides = [1, 1, 1]} : vector<2x18x32xf32> to vector<2x14x32xf32>
    %16 = tpu.concatenate %11, %12, %13, %14, %15 in 2 : vector<2x14x32xf32>, vector<2x14x32xf32>, vector<2x14x32xf32>, vector<2x14x32xf32>, vector<2x14x32xf32> -> vector<2x14x160xf32>
    %17 = vector.shape_cast %16 : vector<2x14x160xf32> to vector<28x160xf32>
    %18 = arith.truncf %17 : vector<28x160xf32> to vector<28x160xbf16>
    %c0_5 = arith.constant 0 : index
    %c0_6 = arith.constant 0 : index
    %19 = vector.load %arg3[%c0_5, %c0_6] : memref<160x48xbf16, #tpu.memory_space<vmem>>, vector<160x48xbf16>
    %cst_7 = arith.constant dense<0.000000e+00> : vector<28x48xf32>
    %20 = tpu.matmul %18, %19, %cst_7 {dimension_numbers = #tpu.dot_dimension_numbers<[1], [0], [0], [1], [0, 0, 1, 1], [], []>} : vector<28x160xbf16>, vector<160x48xbf16>, vector<28x48xf32> -> vector<28x48xf32>
    %21 = vector.shape_cast %20 : vector<28x48xf32> to vector<2x14x48xf32>
    %c0_8 = arith.constant 0 : index
    %c0_9 = arith.constant 0 : index
    %22 = vector.load %arg4[%c0_8, %c0_9] : memref<1x48xf32, #tpu.memory_space<vmem>>, vector<1x48xf32>
    %23 = vector.shape_cast %22 : vector<1x48xf32> to vector<1x1x48xf32>
    %24 = vector.broadcast %23 : vector<1x1x48xf32> to vector<2x14x48xf32>
    %25 = arith.addf %21, %24 : vector<2x14x48xf32>
    %cst_10 = arith.constant 0.000000e+00 : f32
    %26 = vector.broadcast %cst_10 : f32 to vector<2x14x48xf32>
    %27 = arith.maximumf %25, %26 : vector<2x14x48xf32>
    %28 = tpu.iota {dimensions = array<i32: 1>} : vector<2x14x48xi32>
    %29 = tpu.iota {dimensions = array<i32: 2>} : vector<2x14x48xi32>
    %c0_i32 = arith.constant 0 : i32
    %30 = vector.broadcast %c0_i32 : i32 to vector<2x14x48xi32>
    %31 = arith.cmpi sge, %29, %30 : vector<2x14x48xi32>
    %c16_i32 = arith.constant 16 : i32
    %32 = vector.broadcast %c16_i32 : i32 to vector<2x14x48xi32>
    %33 = arith.cmpi slt, %29, %32 : vector<2x14x48xi32>
    %34 = arith.andi %31, %33 : vector<2x14x48xi1>
    %c14_i32 = arith.constant 14 : i32
    %35 = vector.broadcast %c14_i32 : i32 to vector<2x14x48xi32>
    %36 = arith.cmpi slt, %28, %35 : vector<2x14x48xi32>
    %37 = arith.andi %34, %36 : vector<2x14x48xi1>
    %c16_i32_11 = arith.constant 16 : i32
    %38 = vector.broadcast %c16_i32_11 : i32 to vector<2x14x48xi32>
    %39 = arith.cmpi sge, %29, %38 : vector<2x14x48xi32>
    %c32_i32 = arith.constant 32 : i32
    %40 = vector.broadcast %c32_i32 : i32 to vector<2x14x48xi32>
    %41 = arith.cmpi slt, %29, %40 : vector<2x14x48xi32>
    %42 = arith.andi %39, %41 : vector<2x14x48xi1>
    %c13_i32 = arith.constant 13 : i32
    %43 = vector.broadcast %c13_i32 : i32 to vector<2x14x48xi32>
    %44 = arith.cmpi slt, %28, %43 : vector<2x14x48xi32>
    %45 = arith.andi %42, %44 : vector<2x14x48xi1>
    %46 = arith.ori %37, %45 : vector<2x14x48xi1>
    %c32_i32_12 = arith.constant 32 : i32
    %47 = vector.broadcast %c32_i32_12 : i32 to vector<2x14x48xi32>
    %48 = arith.cmpi sge, %29, %47 : vector<2x14x48xi32>
    %c48_i32 = arith.constant 48 : i32
    %49 = vector.broadcast %c48_i32 : i32 to vector<2x14x48xi32>
    %50 = arith.cmpi slt, %29, %49 : vector<2x14x48xi32>
    %51 = arith.andi %48, %50 : vector<2x14x48xi1>
    %c12_i32 = arith.constant 12 : i32
    %52 = vector.broadcast %c12_i32 : i32 to vector<2x14x48xi32>
    %53 = arith.cmpi slt, %28, %52 : vector<2x14x48xi32>
    %54 = arith.andi %51, %53 : vector<2x14x48xi1>
    %55 = arith.ori %46, %54 : vector<2x14x48xi1>
    %cst_13 = arith.constant 0xFF800000 : f32
    %56 = vector.broadcast %cst_13 : f32 to vector<2x14x48xf32>
    %57 = arith.select %55, %27, %56 : vector<2x14x48xi1>, vector<2x14x48xf32>
    %cst_14 = arith.constant dense<0xFF800000> : vector<2x48xf32>
    %58 = vector.multi_reduction <maximumf>, %57, %cst_14 [1] : vector<2x14x48xf32> to vector<2x48xf32>
    %c0_15 = arith.constant 0 : index
    %c0_16 = arith.constant 0 : index
    %59 = vector.load %arg5[%c0_15, %c0_16] : memref<2x48xi32, #tpu.memory_space<vmem>>, vector<2x48xi32>
    %c-2147483648_i32 = arith.constant -2147483648 : i32
    %60 = vector.broadcast %c-2147483648_i32 : i32 to vector<2x48xi32>
    %61 = arith.cmpi uge, %59, %60 : vector<2x48xi32>
    %cst_17 = arith.constant 2.000000e+00 : f32
    %62 = vector.broadcast %cst_17 : f32 to vector<2x48xf32>
    %63 = arith.mulf %58, %62 : vector<2x48xf32>
    %cst_18 = arith.constant 0.000000e+00 : f32
    %64 = vector.broadcast %cst_18 : f32 to vector<2x48xf32>
    %65 = arith.select %61, %63, %64 : vector<2x48xi1>, vector<2x48xf32>
    %66 = arith.truncf %65 : vector<2x48xf32> to vector<2x48xbf16>
    %c0_19 = arith.constant 0 : index
    %c0_20 = arith.constant 0 : index
    %67 = vector.load %arg6[%c0_19, %c0_20] : memref<48x128xbf16, #tpu.memory_space<vmem>>, vector<48x128xbf16>
    %cst_21 = arith.constant dense<0.000000e+00> : vector<2x128xf32>
    %68 = tpu.matmul %66, %67, %cst_21 {dimension_numbers = #tpu.dot_dimension_numbers<[1], [0], [0], [1], [0, 0, 1, 1], [], []>} : vector<2x48xbf16>, vector<48x128xbf16>, vector<2x128xf32> -> vector<2x128xf32>
    %c0_22 = arith.constant 0 : index
    %c0_23 = arith.constant 0 : index
    %69 = vector.load %arg7[%c0_22, %c0_23] : memref<1x128xf32, #tpu.memory_space<vmem>>, vector<1x128xf32>
    %70 = vector.broadcast %69 : vector<1x128xf32> to vector<2x128xf32>
    %71 = arith.addf %68, %70 : vector<2x128xf32>
    %c0_24 = arith.constant 0 : index
    %c0_25 = arith.constant 0 : index
    %72 = vector.load %arg8[%c0_24, %c0_25] : memref<2x128xf32, #tpu.memory_space<vmem>>, vector<2x128xf32>
    tpu.vector_store %arg8[%c0_24, %c0_25], %71 {strides = array<i32>} : memref<2x128xf32, #tpu.memory_space<vmem>>, vector<2x128xf32>,
    return
  }
  func.func @transform_0(%arg0: i32) -> (i32, i32) {
    %c0_i32 = arith.constant 0 : i32
    %c0_i32_0 = arith.constant 0 : i32
    %c0_i32_1 = arith.constant 0 : i32
    return %c0_i32, %c0_i32_0 : i32, i32
  }
  func.func @transform_1(%arg0: i32) -> (i32, i32) {
    %c0_i32 = arith.constant 0 : i32
    %c0_i32_0 = arith.constant 0 : i32
    %c0_i32_1 = arith.constant 0 : i32
    return %c0_i32, %c0_i32_0 : i32, i32
  }
  func.func @transform_2(%arg0: i32) -> (i32, i32) {
    %c0_i32 = arith.constant 0 : i32
    %c0_i32_0 = arith.constant 0 : i32
    %c0_i32_1 = arith.constant 0 : i32
    return %c0_i32, %c0_i32_0 : i32, i32
  }
  func.func @transform_3(%arg0: i32) -> (i32, i32) {
    %c0_i32 = arith.constant 0 : i32
    %c0_i32_0 = arith.constant 0 : i32
    %c0_i32_1 = arith.constant 0 : i32
    return %c0_i32, %c0_i32_0 : i32, i32
  }
  func.func @transform_4(%arg0: i32) -> (i32, i32) {
    %c0_i32 = arith.constant 0 : i32
    %c0_i32_0 = arith.constant 0 : i32
    %c0_i32_1 = arith.constant 0 : i32
    return %c0_i32, %c0_i32_0 : i32, i32
  }
  func.func @transform_5(%arg0: i32) -> (i32, i32) {
    %c0_i32 = arith.constant 0 : i32
    %c0_i32_0 = arith.constant 0 : i32
    %c0_i32_1 = arith.constant 0 : i32
    return %c0_i32, %c0_i32_0 : i32, i32
  }
  func.func @transform_6(%arg0: i32) -> (i32, i32) {
    %c0_i32 = arith.constant 0 : i32
    %c0_i32_0 = arith.constant 0 : i32
    %c0_i32_1 = arith.constant 0 : i32
    return %c0_i32, %c0_i32_0 : i32, i32
  }
  func.func @transform_7(%arg0: i32) -> (i32, i32) {
    %c0_i32 = arith.constant 0 : i32
    %c0_i32_0 = arith.constant 0 : i32
    %c0_i32_1 = arith.constant 0 : i32
    return %c0_i32, %c0_i32_0 : i32, i32
  }
}

</mosaic_0001>

<llo_original>
// kernel: tpu_custom_call.1
$region0: #{tpu_custom_call.1}
  #allocation0 [shape = 'u32[]', space=smem, size = 0x4, offset = 0x4, fixed_abs, tag = 'smem constant byte address 0x4 - core index']
  #allocation1 [shape = 'u32[144,128]{1,0:T(1,128)}', space=vmem, size = 0x12000, scoped, tag = 'internal scratch']
  %s0 = inlined_call_operand.vmem [shape: s32[36,1], index: 0, kind: input, shape index: {}]
  %s1 = inlined_call_operand.vmem [shape: bf16[50,32], index: 1, kind: input, shape index: {}]
  %s2 = inlined_call_operand.vmem [shape: bf16[160,48], index: 2, kind: input, shape index: {}]
  %s3 = inlined_call_operand.vmem [shape: f32[1,48], index: 3, kind: input, shape index: {}]
  %s4 = inlined_call_operand.vmem [shape: u32[2,48], index: 4, kind: input, shape index: {}]
  %s5 = inlined_call_operand.vmem [shape: bf16[48,128], index: 5, kind: input, shape index: {}]
  %s6 = inlined_call_operand.vmem [shape: f32[1,128], index: 6, kind: input, shape index: {}]
  %s7 = inlined_call_operand.hbm [shape: f32[2,128], index: 7, kind: output, shape index: {}]
  %s8 = sld [smem:[#allocation0]]
  $region38: #{tpu_custom_call.1} parent=0
    _
  %s10 = ssub.s32 1, %s8
  %s11 = scalar_select 0, %s10, %s8
  $region1: #{tpu_custom_call.1} parent=0
    #allocation2 [shape = 'u8[1024]{0}', space=vmem, size = 0x400, scoped, tag = 'output window, operand 0, single buffered']
    #allocation3 [shape = 's32[1]{0}', space=sflag, size = 0x4, scoped, tag = 'scoped memory for tpu_custom_call.1']
    %12 = vsyncpa [#allocation3], 0
    // Predicated region
    $region2: #{tpu_custom_call.1} parent=1 // pred_check
      _
    $region3: #{tpu_custom_call.1} parent=1 // pred_check_branch
      %14 = sbr.rel (0) target = $region5
    $region4: #{tpu_custom_call.1} parent=1 // pred_region
      _
    $region5: #{tpu_custom_call.1} parent=1 // pred_fallthru
      _
    // Predicated region
    $region6: #{tpu_custom_call.1} parent=1 // pred_check
      _
    $region7: #{tpu_custom_call.1} parent=1 // pred_check_branch
      %16 = sbr.rel (0) target = $region9
    $region8: #{tpu_custom_call.1} parent=1 // pred_region
      _
    $region9: #{tpu_custom_call.1} parent=1 // pred_fallthru
      _
    // Predicated region
    $region10: #{tpu_custom_call.1} parent=1 // pred_check
      _
    $region11: #{tpu_custom_call.1} parent=1 // pred_check_branch
      %18 = sbr.rel (0) target = $region13
    $region12: #{tpu_custom_call.1} parent=1 // pred_region
      _
    $region13: #{tpu_custom_call.1} parent=1 // pred_fallthru
      _
    // Predicated region
    $region14: #{tpu_custom_call.1} parent=1 // pred_check
      _
    $region15: #{tpu_custom_call.1} parent=1 // pred_check_branch
      %20 = sbr.rel (0) target = $region17
    $region16: #{tpu_custom_call.1} parent=1 // pred_region
      _
    $region17: #{tpu_custom_call.1} parent=1 // pred_fallthru
      _
    // Predicated region
    $region18: #{tpu_custom_call.1} parent=1 // pred_check
      _
    $region19: #{tpu_custom_call.1} parent=1 // pred_check_branch
      %22 = sbr.rel (0) target = $region21
    $region20: #{tpu_custom_call.1} parent=1 // pred_region
      _
    $region21: #{tpu_custom_call.1} parent=1 // pred_fallthru
      _
    // Predicated region
    $region22: #{tpu_custom_call.1} parent=1 // pred_check
      _
    $region23: #{tpu_custom_call.1} parent=1 // pred_check_branch
      %24 = sbr.rel (0) target = $region25
    $region24: #{tpu_custom_call.1} parent=1 // pred_region
      _
    $region25: #{tpu_custom_call.1} parent=1 // pred_fallthru
      _
    // Predicated region
    $region26: #{tpu_custom_call.1} parent=1 // pred_check
      _
    $region27: #{tpu_custom_call.1} parent=1 // pred_check_branch
      %26 = sbr.rel (0) target = $region29
    $region28: #{tpu_custom_call.1} parent=1 // pred_region
      _
    $region29: #{tpu_custom_call.1} parent=1 // pred_fallthru
      _
    %v28 = vld [vmem:[%s0] sm:$0xff]
    %v29 = vld [vmem:[%s0 + $0x8] sm:$0xff]
    %v30 = vld [vmem:[%s0 + $0x10] sm:$0xff]
    %v31 = vld [vmem:[%s0 + $0x18] sm:$0xff]
    %v32 = vld [vmem:[%s0 + $0x20] sm:$0xf]
    %v33 = vlaneseq
    %v34 = vand.u32 %v33, 127
    %35 = vset.pattern.permute.xlu0 0
    %36 = vperm.xlu0 %35, %v28
    %v37 = vpop.permute.xlu0 %36
    %38 = vset.pattern.permute.xlu0 0
    %39 = vperm.xlu0 %38, %v29
    %v40 = vpop.permute.xlu0 %39
    %41 = vset.pattern.permute.xlu0 0
    %42 = vperm.xlu0 %41, %v30
    %v43 = vpop.permute.xlu0 %42
    %44 = vset.pattern.permute.xlu0 0
    %45 = vperm.xlu0 %44, %v31
    %v46 = vpop.permute.xlu0 %45
    %47 = vset.pattern.permute.xlu0 0
    %48 = vperm.xlu0 %47, %v32
    %v49 = vpop.permute.xlu0 %48
    %vm50 = vcmp.eq.s32.totalorder %v37, %v34
    %vm51 = vcmp.eq.s32.totalorder %v40, %v34
    %vm52 = vcmp.eq.s32.totalorder %v43, %v34
    %vm53 = vcmp.eq.s32.totalorder %v46, %v34
    %vm54 = vcmp.eq.s32.totalorder %v49, %v34
    %v55 = vsel %vm50, 1.0, 0.0
    %v56 = vsel %vm51, 1.0, 0.0
    %v57 = vsel %vm52, 1.0, 0.0
    %v58 = vsel %vm53, 1.0, 0.0
    %v59 = vsel %vm54, 1.0, 0.0
    %v60 = vpack.c.bf16 %v56, %v55
    %v61 = vpack.c.bf16 %v58, %v57
    %v62 = vpack.c.bf16 %v59, %v59
    %v63 = vld [vmem:[%s1] sm:$0xf]
    %v64 = vld [vmem:[%s1 + $0x4] sm:$0xf]
    %v65 = vld [vmem:[%s1 + $0x8] sm:$0xf]
    %v66 = vld [vmem:[%s1 + $0xc] sm:$0xf]
    %v67 = vld [vmem:[%s1 + $0x10] sm:$0xf]
    %v68 = vld [vmem:[%s1 + $0x14] sm:$0xf]
    %v69 = vld [vmem:[%s1 + $0x18] sm:$0x1]
    %v77 = vunpack.c.l.b16 %v63
    %v78 = vunpack.c.l.b16 %v64
    %v79 = vunpack.c.l.b16 %v65
    %v80 = vunpack.c.l.b16 %v66
    %v81 = vunpack.c.l.b16 %v67
    %v82 = vunpack.c.l.b16 %v68
    %v83 = vunpack.c.l.b16 %v69
    %v84 = vpack.c.b16 %v78, %v77
    %v85 = vpack.c.b16 %v80, %v79
    %v86 = vpack.c.b16 %v82, %v81
    %v87 = vpack.c.b16 %v83, %v83
    %vm91 = vcmask 408576
    %v93 = vsel %vm91, %v60, 0
    %v96 = vsel %vm91, %v61, 0
    %v99 = vsel %vm91, %v62, 0
    %vm101 = vcmask 1040384
    %v103 = vsel %vm101, %v87, 0
    %105 = vmatprep.subr.bf16.mxu0 0
    %106 = vmatpush1.bf16.msra.mxu0 %v84
    %107 = vmatprep.subr.bf16.mxu0 0
    %108 = vmatpush1.bf16.msra.mxu0 %v85
    %109 = vmatprep.subr.bf16.mxu0 0
    %110 = vmatpush1.bf16.msra.mxu0 %v86
    %111 = vmatprep.subr.bf16.mxu0 0
    %112 = vmatpush1.bf16.msra.mxu0 %v103
    %113 = vmatprep.subr.bf16.mxu0 0
    %114 = vmatpush1.bf16.msra.mxu0 0
    %115 = vmatprep.subr.bf16.mxu0 0
    %116 = vmatpush1.bf16.msra.mxu0 0
    %117 = vmatprep.subr.bf16.mxu0 0
    %118 = vmatpush1.bf16.msra.mxu0 0
    %119 = vmatprep.subr.bf16.mxu0 0
    %120 = vmatpush1.bf16.msra.mxu0 0
    %121 = vmatprep.subr.bf16.mxu0 0
    %122 = vmatpush1.bf16.msra.mxu0 0
    %123 = vmatprep.subr.bf16.mxu0 0
    %124 = vmatpush1.bf16.msra.mxu0 0
    %125 = vmatprep.subr.bf16.mxu0 0
    %126 = vmatpush1.bf16.msra.mxu0 0
    %127 = vmatprep.subr.bf16.mxu0 0
    %128 = vmatpush1.bf16.msra.mxu0 0
    %129 = vmatprep.subr.bf16.mxu0 0
    %130 = vmatpush1.bf16.msra.mxu0 0
    %131 = vmatprep.subr.bf16.mxu0 0
    %132 = vmatpush1.bf16.msra.mxu0 0
    %133 = vmatprep.subr.bf16.mxu0 0
    %134 = vmatpush1.bf16.msra.mxu0 0
    %135 = vmatprep.subr.bf16.mxu0 0
    %136 = vmatpush1.bf16.msra.mxu0 0
    %137 = vmatprep.mubr.bf16.mxu0 0
    %138 = vmatmul.mubr.bf16.gmra.mrb[0].mxu0 %v93
    %v139 = vpop.f32.mrb[0].mxu0
    %v140 = vadd.f32 0.0, %v139
    %v141 = vpop.f32.mrb[0].mxu0
    %v142 = vpop.f32.mrb[0].mxu0
    %v143 = vadd.f32 0.0, %v142
    %v144 = vpop.f32.mrb[0].mxu0
    %145 = vmatprep.mubr.bf16.mxu0 0
    %146 = vmatmul.mubr.bf16.gmra.mrb[0].mxu0 %v96
    %v147 = vpop.f32.mrb[0].mxu0
    %v148 = vadd.f32 0.0, %v147
    %v149 = vpop.f32.mrb[0].mxu0
    %v150 = vpop.f32.mrb[0].mxu0
    %v151 = vadd.f32 0.0, %v150
    %v152 = vpop.f32.mrb[0].mxu0
    %153 = vmatprep.mubr.bf16.mxu0 0
    %154 = vmatmul.mubr.bf16.gmra.mrb[0].mxu0 %v99
    %v155 = vpop.f32.mrb[0].mxu0
    %v156 = vadd.f32 0.0, %v155
    %v157 = vpop.f32.mrb[0].mxu0
    %v158 = vpop.f32.mrb[0].mxu0
    %v159 = vpop.f32.mrb[0].mxu0
    %160 = vdwg.mxu0
    %v166 = vcombine.high %v140, %v140
    %v168 = vunpack.c.l.s4 1983009808
    %v169 = vunpack.c.0.s8 %v168
    %v170 = vlaneseq
    %v171 = vshrl.u32 %v170, 7
    %v172 = vsub.s32 %v169, %v171
    %v173 = vrot.slane %v140, %v172
    %v175 = vunpack.c.l.s4 1983009808
    %v176 = vunpack.c.0.s8 %v175
    %v177 = vlaneseq
    %v178 = vshrl.u32 %v177, 7
    %v179 = vsub.s32 %v176, %v178
    %v180 = vrot.slane %v166, %v179
    %v181 = vcombine.high %v173, %v173
    %v182 = vcombine.high %v180, %v180
    %v183 = vcombine.high %v143, %v143
    %v185 = vunpack.c.l.s4 1983009808
    %v186 = vunpack.c.0.s8 %v185
    %v187 = vlaneseq
    %v188 = vshrl.u32 %v187, 7
    %v189 = vsub.s32 %v186, %v188
    %v190 = vrot.slane %v143, %v189
    %v192 = vunpack.c.l.s4 1983009808
    %v193 = vunpack.c.0.s8 %v192
    %v194 = vlaneseq
    %v195 = vshrl.u32 %v194, 7
    %v196 = vsub.s32 %v193, %v195
    %v197 = vrot.slane %v183, %v196
    %v198 = vcombine.high %v190, %v190
    %v199 = vcombine.high %v197, %v197
    %v200 = vcombine.high %v148, %v148
    %v202 = vunpack.c.l.s4 1983009808
    %v203 = vunpack.c.0.s8 %v202
    %v204 = vlaneseq
    %v205 = vshrl.u32 %v204, 7
    %v206 = vsub.s32 %v203, %v205
    %v207 = vrot.slane %v148, %v206
    %v209 = vunpack.c.l.s4 1983009808
    %v210 = vunpack.c.0.s8 %v209
    %v211 = vlaneseq
    %v212 = vshrl.u32 %v211, 7
    %v213 = vsub.s32 %v210, %v212
    %v214 = vrot.slane %v200, %v213
    %v215 = vcombine.high %v207, %v207
    %v216 = vcombine.high %v214, %v214
    %v217 = vcombine.high %v151, %v151
    %v219 = vunpack.c.l.s4 1983009808
    %v220 = vunpack.c.0.s8 %v219
    %v221 = vlaneseq
    %v222 = vshrl.u32 %v221, 7
    %v223 = vsub.s32 %v220, %v222
    %v224 = vrot.slane %v151, %v223
    %v226 = vunpack.c.l.s4 1983009808
    %v227 = vunpack.c.0.s8 %v226
    %v228 = vlaneseq
    %v229 = vshrl.u32 %v228, 7
    %v230 = vsub.s32 %v227, %v229
    %v231 = vrot.slane %v217, %v230
    %v232 = vcombine.high %v224, %v224
    %v233 = vcombine.high %v231, %v231
    %v235 = vunpack.c.l.s4 1983009808
    %v236 = vunpack.c.0.s8 %v235
    %v237 = vlaneseq
    %v238 = vshrl.u32 %v237, 7
    %v239 = vsub.s32 %v236, %v238
    %v240 = vrot.slane %v156, %v239
    %v241 = vcombine.high %v240, %v240
    %v242 = vcombine.low %v173, %v181
    %v243 = vcombine.low %v180, %v182
    %v245 = vunpack.c.l.s4 1983009808
    %v246 = vunpack.c.0.s8 %v245
    %v247 = vlaneseq
    %v248 = vshrl.u32 %v247, 7
    %v249 = vsub.s32 %v246, %v248
    %v250 = vrot.slane %v242, %v249
    %v252 = vunpack.c.l.s4 1983009808
    %v253 = vunpack.c.0.s8 %v252
    %v254 = vlaneseq
    %v255 = vshrl.u32 %v254, 7
    %v256 = vsub.s32 %v253, %v255
    %v257 = vrot.slane %v243, %v256
    %v258 = vcombine.low %v250, %v257
    %v259 = vcombine.low %v190, %v198
    %v261 = vunpack.c.l.s4 1983009808
    %v262 = vunpack.c.0.s8 %v261
    %v263 = vlaneseq
    %v264 = vshrl.u32 %v263, 7
    %v265 = vsub.s32 %v262, %v264
    %v266 = vrot.slane %v259, %v265
    %v268 = vunpack.c.l.s4 1983009808
    %v269 = vunpack.c.0.s8 %v268
    %v270 = vlaneseq
    %v271 = vshrl.u32 %v270, 7
    %v272 = vsub.s32 %v269, %v271
    %v273 = vrot.slane %v197, %v272
    %v274 = vcombine.low %v266, %v273
    %v275 = vcombine.low %v215, %v214
    %v276 = vcombine.low %v216, %v224
    %v278 = vunpack.c.l.s4 1983009808
    %v279 = vunpack.c.0.s8 %v278
    %v280 = vlaneseq
    %v281 = vshrl.u32 %v280, 7
    %v282 = vsub.s32 %v279, %v281
    %v283 = vrot.slane %v275, %v282
    %v285 = vunpack.c.l.s4 1983009808
    %v286 = vunpack.c.0.s8 %v285
    %v287 = vlaneseq
    %v288 = vshrl.u32 %v287, 7
    %v289 = vsub.s32 %v286, %v288
    %v290 = vrot.slane %v276, %v289
    %v291 = vcombine.low %v283, %v290
    %v292 = vcombine.low %v232, %v231
    %v294 = vunpack.c.l.s4 1983009808
    %v295 = vunpack.c.0.s8 %v294
    %v296 = vlaneseq
    %v297 = vshrl.u32 %v296, 7
    %v298 = vsub.s32 %v295, %v297
    %v299 = vrot.slane %v292, %v298
    %v301 = vunpack.c.l.s4 1983009808
    %v302 = vunpack.c.0.s8 %v301
    %v303 = vlaneseq
    %v304 = vshrl.u32 %v303, 7
    %v305 = vsub.s32 %v302, %v304
    %v306 = vrot.slane %v233, %v305
    %v307 = vcombine.low %v299, %v306
    %v312 = vcombine.low %v197, %v199
    %v314 = vunpack.c.l.s4 1983009808
    %v315 = vunpack.c.0.s8 %v314
    %v316 = vlaneseq
    %v317 = vshrl.u32 %v316, 7
    %v318 = vsub.s32 %v315, %v317
    %v319 = vrot.slane %v312, %v318
    %v320 = vcombine.low %v266, %v319
    %v321 = vcombine.low %v233, %v240
    %v323 = vunpack.c.l.s4 1983009808
    %v324 = vunpack.c.0.s8 %v323
    %v325 = vlaneseq
    %v326 = vshrl.u32 %v325, 7
    %v327 = vsub.s32 %v324, %v326
    %v328 = vrot.slane %v321, %v327
    %v329 = vcombine.low %v299, %v328
    %vm330 = vcmask 1046528
    %v331 = vrot.slane %v258, 1
    %v332 = vrot.slane %v320, 1
    %v333 = vsel %vm330, %v331, %v332
    %v334 = vrot.slane %v291, 1
    %v335 = vrot.slane %v329, 1
    %v336 = vsel %vm330, %v334, %v335
    %337 = vrot.lane.b32.xlu0 %v333, 32
    %v338 = vpop.permute.xlu0 %337
    %339 = vrot.lane.b32.xlu0 %v332, 32
    %v340 = vpop.permute.xlu0 %339
    %341 = vrot.lane.b32.xlu0 %v336, 32
    %v342 = vpop.permute.xlu0 %341
    %343 = vrot.lane.b32.xlu0 %v335, 32
    %v344 = vpop.permute.xlu0 %343
    %v349 = vcombine.low %v181, %v180
    %v350 = vcombine.low %v182, %v190
    %v352 = vunpack.c.l.s4 1983009808
    %v353 = vunpack.c.0.s8 %v352
    %v354 = vlaneseq
    %v355 = vshrl.u32 %v354, 7
    %v356 = vsub.s32 %v353, %v355
    %v357 = vrot.slane %v349, %v356
    %v359 = vunpack.c.l.s4 1983009808
    %v360 = vunpack.c.0.s8 %v359
    %v361 = vlaneseq
    %v362 = vshrl.u32 %v361, 7
    %v363 = vsub.s32 %v360, %v362
    %v364 = vrot.slane %v350, %v363
    %v365 = vcombine.low %v357, %v364
    %v366 = vcombine.low %v198, %v197
    %v368 = vunpack.c.l.s4 1983009808
    %v369 = vunpack.c.0.s8 %v368
    %v370 = vlaneseq
    %v371 = vshrl.u32 %v370, 7
    %v372 = vsub.s32 %v369, %v371
    %v373 = vrot.slane %v366, %v372
    %v375 = vunpack.c.l.s4 1983009808
    %v376 = vunpack.c.0.s8 %v375
    %v377 = vlaneseq
    %v378 = vshrl.u32 %v377, 7
    %v379 = vsub.s32 %v376, %v378
    %v380 = vrot.slane %v199, %v379
    %v381 = vcombine.low %v373, %v380
    %v382 = vcombine.low %v214, %v216
    %v383 = vcombine.low %v224, %v232
    %v385 = vunpack.c.l.s4 1983009808
    %v386 = vunpack.c.0.s8 %v385
    %v387 = vlaneseq
    %v388 = vshrl.u32 %v387, 7
    %v389 = vsub.s32 %v386, %v388
    %v390 = vrot.slane %v382, %v389
    %v392 = vunpack.c.l.s4 1983009808
    %v393 = vunpack.c.0.s8 %v392
    %v394 = vlaneseq
    %v395 = vshrl.u32 %v394, 7
    %v396 = vsub.s32 %v393, %v395
    %v397 = vrot.slane %v383, %v396
    %v398 = vcombine.low %v390, %v397
    %v399 = vcombine.low %v231, %v233
    %v401 = vunpack.c.l.s4 1983009808
    %v402 = vunpack.c.0.s8 %v401
    %v403 = vlaneseq
    %v404 = vshrl.u32 %v403, 7
    %v405 = vsub.s32 %v402, %v404
    %v406 = vrot.slane %v399, %v405
    %v408 = vunpack.c.l.s4 1983009808
    %v409 = vunpack.c.0.s8 %v408
    %v410 = vlaneseq
    %v411 = vshrl.u32 %v410, 7
    %v412 = vsub.s32 %v409, %v411
    %v413 = vrot.slane %v240, %v412
    %v414 = vcombine.low %v406, %v413
    %415 = vrot.lane.b32.xlu0 %v365, 64
    %v416 = vpop.permute.xlu0 %415
    %417 = vrot.lane.b32.xlu0 %v381, 64
    %v418 = vpop.permute.xlu0 %417
    %419 = vrot.lane.b32.xlu0 %v398, 64
    %v420 = vpop.permute.xlu0 %419
    %421 = vrot.lane.b32.xlu0 %v414, 64
    %v422 = vpop.permute.xlu0 %421
    %v427 = vcombine.low %v199, %v207
    %v429 = vunpack.c.l.s4 1983009808
    %v430 = vunpack.c.0.s8 %v429
    %v431 = vlaneseq
    %v432 = vshrl.u32 %v431, 7
    %v433 = vsub.s32 %v430, %v432
    %v434 = vrot.slane %v427, %v433
    %v435 = vcombine.low %v373, %v434
    %v436 = vcombine.low %v240, %v241
    %v438 = vunpack.c.l.s4 1983009808
    %v439 = vunpack.c.0.s8 %v438
    %v440 = vlaneseq
    %v441 = vshrl.u32 %v440, 7
    %v442 = vsub.s32 %v439, %v441
    %v443 = vrot.slane %v436, %v442
    %v444 = vcombine.low %v406, %v443
    %v445 = vrot.slane %v365, 1
    %v446 = vrot.slane %v435, 1
    %v447 = vsel %vm330, %v445, %v446
    %v448 = vrot.slane %v398, 1
    %v449 = vrot.slane %v444, 1
    %v450 = vsel %vm330, %v448, %v449
    %451 = vrot.lane.b32.xlu0 %v447, 96
    %v452 = vpop.permute.xlu0 %451
    %453 = vrot.lane.b32.xlu0 %v446, 96
    %v454 = vpop.permute.xlu0 %453
    %455 = vrot.lane.b32.xlu0 %v450, 96
    %v456 = vpop.permute.xlu0 %455
    %457 = vrot.lane.b32.xlu0 %v449, 96
    %v458 = vpop.permute.xlu0 %457
    %v463 = vcombine.low %v257, %v266
    %v465 = vunpack.c.l.s4 1983009808
    %v466 = vunpack.c.0.s8 %v465
    %v467 = vlaneseq
    %v468 = vshrl.u32 %v467, 7
    %v469 = vsub.s32 %v466, %v468
    %v470 = vrot.slane %v207, %v469
    %v471 = vcombine.low %v319, %v470
    %v472 = vcombine.low %v290, %v299
    %v474 = vunpack.c.l.s4 1983009808
    %v475 = vunpack.c.0.s8 %v474
    %v476 = vlaneseq
    %v477 = vshrl.u32 %v476, 7
    %v478 = vsub.s32 %v475, %v477
    %v479 = vrot.slane %v241, %v478
    %v480 = vcombine.low %v328, %v479
    %vm481 = vcmask 261120
    %v482 = vsel %vm481, %v258, %v338
    %v483 = vsel %vm481, %v274, %v340
    %v484 = vsel %vm481, %v291, %v342
    %v485 = vsel %vm481, %v307, %v344
    %vm486 = vcmask 523264
    %v487 = vsel %vm486, %v482, %v416
    %v488 = vsel %vm486, %v483, %v418
    %v489 = vsel %vm486, %v484, %v420
    %v490 = vsel %vm486, %v485, %v422
    %vm491 = vcmask 785408
    %v492 = vsel %vm491, %v487, %v452
    %v493 = vsel %vm491, %v488, %v454
    %v494 = vsel %vm491, %v489, %v456
    %v495 = vsel %vm491, %v490, %v458
    %v500 = vcombine.low %v492, %v463
    %v501 = vcombine.high %v492, %v463
    %v503 = vunpack.c.l.s4 1983009808
    %v504 = vunpack.c.0.s8 %v503
    %v505 = vlaneseq
    %v506 = vshrl.u32 %v505, 7
    %v507 = vsub.s32 %v504, %v506
    %v508 = vrot.slane %v500, %v507
    %v510 = vunpack.c.l.s4 1983009808
    %v511 = vunpack.c.0.s8 %v510
    %v512 = vlaneseq
    %v513 = vshrl.u32 %v512, 7
    %v514 = vsub.s32 %v511, %v513
    %v515 = vrot.slane %v501, %v514
    %v516 = vcombine.high %v508, %v508
    %v517 = vcombine.high %v515, %v515
    %v518 = vcombine.low %v493, %v471
    %v519 = vcombine.high %v493, %v471
    %v521 = vunpack.c.l.s4 1983009808
    %v522 = vunpack.c.0.s8 %v521
    %v523 = vlaneseq
    %v524 = vshrl.u32 %v523, 7
    %v525 = vsub.s32 %v522, %v524
    %v526 = vrot.slane %v518, %v525
    %v528 = vunpack.c.l.s4 1983009808
    %v529 = vunpack.c.0.s8 %v528
    %v530 = vlaneseq
    %v531 = vshrl.u32 %v530, 7
    %v532 = vsub.s32 %v529, %v531
    %v533 = vrot.slane %v519, %v532
    %v534 = vcombine.high %v526, %v526
    %v535 = vcombine.low %v494, %v472
    %v536 = vcombine.high %v494, %v472
    %v538 = vunpack.c.l.s4 1983009808
    %v539 = vunpack.c.0.s8 %v538
    %v540 = vlaneseq
    %v541 = vshrl.u32 %v540, 7
    %v542 = vsub.s32 %v539, %v541
    %v543 = vrot.slane %v535, %v542
    %v545 = vunpack.c.l.s4 1983009808
    %v546 = vunpack.c.0.s8 %v545
    %v547 = vlaneseq
    %v548 = vshrl.u32 %v547, 7
    %v549 = vsub.s32 %v546, %v548
    %v550 = vrot.slane %v536, %v549
    %v551 = vcombine.high %v543, %v543
    %v552 = vcombine.high %v550, %v550
    %v553 = vcombine.low %v495, %v480
    %v554 = vcombine.high %v495, %v480
    %v556 = vunpack.c.l.s4 1983009808
    %v557 = vunpack.c.0.s8 %v556
    %v558 = vlaneseq
    %v559 = vshrl.u32 %v558, 7
    %v560 = vsub.s32 %v557, %v559
    %v561 = vrot.slane %v553, %v560
    %v563 = vunpack.c.l.s4 1983009808
    %v564 = vunpack.c.0.s8 %v563
    %v565 = vlaneseq
    %v566 = vshrl.u32 %v565, 7
    %v567 = vsub.s32 %v564, %v566
    %v568 = vrot.slane %v554, %v567
    %v569 = vcombine.high %v561, %v561
    %v570 = vcombine.low %v508, %v516
    %v571 = vcombine.low %v515, %v517
    %v573 = vunpack.c.l.s4 1983009808
    %v574 = vunpack.c.0.s8 %v573
    %v575 = vlaneseq
    %v576 = vshrl.u32 %v575, 7
    %v577 = vsub.s32 %v574, %v576
    %v578 = vrot.slane %v570, %v577
    %v580 = vunpack.c.l.s4 1983009808
    %v581 = vunpack.c.0.s8 %v580
    %v582 = vlaneseq
    %v583 = vshrl.u32 %v582, 7
    %v584 = vsub.s32 %v581, %v583
    %v585 = vrot.slane %v571, %v584
    %v586 = vcombine.low %v578, %v585
    %v587 = vcombine.high %v578, %v585
    %v588 = vcombine.low %v526, %v534
    %v589 = vcombine.low %v533, %v543
    %v591 = vunpack.c.l.s4 1983009808
    %v592 = vunpack.c.0.s8 %v591
    %v593 = vlaneseq
    %v594 = vshrl.u32 %v593, 7
    %v595 = vsub.s32 %v592, %v594
    %v596 = vrot.slane %v588, %v595
    %v598 = vunpack.c.l.s4 1983009808
    %v599 = vunpack.c.0.s8 %v598
    %v600 = vlaneseq
    %v601 = vshrl.u32 %v600, 7
    %v602 = vsub.s32 %v599, %v601
    %v603 = vrot.slane %v589, %v602
    %v604 = vcombine.low %v596, %v603
    %v605 = vcombine.high %v596, %v603
    %v606 = vcombine.low %v551, %v550
    %v607 = vcombine.low %v552, %v561
    %v609 = vunpack.c.l.s4 1983009808
    %v610 = vunpack.c.0.s8 %v609
    %v611 = vlaneseq
    %v612 = vshrl.u32 %v611, 7
    %v613 = vsub.s32 %v610, %v612
    %v614 = vrot.slane %v606, %v613
    %v616 = vunpack.c.l.s4 1983009808
    %v617 = vunpack.c.0.s8 %v616
    %v618 = vlaneseq
    %v619 = vshrl.u32 %v618, 7
    %v620 = vsub.s32 %v617, %v619
    %v621 = vrot.slane %v607, %v620
    %v622 = vcombine.low %v614, %v621
    %v623 = vcombine.high %v614, %v621
    %v624 = vcombine.low %v569, %v568
    %v626 = vunpack.c.l.s4 1983009808
    %v627 = vunpack.c.0.s8 %v626
    %v628 = vlaneseq
    %v629 = vshrl.u32 %v628, 7
    %v630 = vsub.s32 %v627, %v629
    %v631 = vrot.slane %v624, %v630
    %v632 = vcombine.high %v631, %v631
    %v641 = vpack.c.bf16 %v604, %v586
    %v642 = vpack.c.bf16 %v605, %v587
    %v643 = vpack.c.bf16 %v631, %v622
    %v644 = vpack.c.bf16 %v632, %v623
    %v645 = vld [vmem:[%s2] sm:$0xf]
    %v646 = vld [vmem:[%s2 + $0x4] sm:$0xf]
    %v647 = vld [vmem:[%s2 + $0x8] sm:$0xf]
    %v648 = vld [vmem:[%s2 + $0xc] sm:$0xf]
    %v649 = vld [vmem:[%s2 + $0x10] sm:$0xf]
    %v650 = vld [vmem:[%s2 + $0x14] sm:$0xf]
    %v651 = vld [vmem:[%s2 + $0x18] sm:$0xf]
    %v652 = vld [vmem:[%s2 + $0x1c] sm:$0xf]
    %v653 = vld [vmem:[%s2 + $0x20] sm:$0xf]
    %v654 = vld [vmem:[%s2 + $0x24] sm:$0xf]
    %v655 = vld [vmem:[%s2 + $0x28] sm:$0xf]
    %v656 = vld [vmem:[%s2 + $0x2c] sm:$0xf]
    %v657 = vld [vmem:[%s2 + $0x30] sm:$0xf]
    %v658 = vld [vmem:[%s2 + $0x34] sm:$0xf]
    %v659 = vld [vmem:[%s2 + $0x38] sm:$0xf]
    %v660 = vld [vmem:[%s2 + $0x3c] sm:$0xf]
    %v661 = vld [vmem:[%s2 + $0x40] sm:$0xf]
    %v662 = vld [vmem:[%s2 + $0x44] sm:$0xf]
    %v663 = vld [vmem:[%s2 + $0x48] sm:$0xf]
    %v664 = vld [vmem:[%s2 + $0x4c] sm:$0xf]
    %v685 = vunpack.c.l.b16 %v645
    %v686 = vunpack.c.l.b16 %v646
    %v687 = vunpack.c.l.b16 %v647
    %v688 = vunpack.c.l.b16 %v648
    %v689 = vunpack.c.l.b16 %v649
    %v690 = vunpack.c.l.b16 %v650
    %v691 = vunpack.c.l.b16 %v651
    %v692 = vunpack.c.l.b16 %v652
    %v693 = vunpack.c.l.b16 %v653
    %v694 = vunpack.c.l.b16 %v654
    %v695 = vunpack.c.l.b16 %v655
    %v696 = vunpack.c.l.b16 %v656
    %v697 = vunpack.c.l.b16 %v657
    %v698 = vunpack.c.l.b16 %v658
    %v699 = vunpack.c.l.b16 %v659
    %v700 = vunpack.c.l.b16 %v660
    %v701 = vunpack.c.l.b16 %v661
    %v702 = vunpack.c.l.b16 %v662
    %v703 = vunpack.c.l.b16 %v663
    %v704 = vunpack.c.l.b16 %v664
    %v705 = vpack.c.b16 %v686, %v685
    %v706 = vpack.c.b16 %v688, %v687
    %v707 = vpack.c.b16 %v690, %v689
    %v708 = vpack.c.b16 %v692, %v691
    %v709 = vpack.c.b16 %v694, %v693
    %v710 = vpack.c.b16 %v696, %v695
    %v711 = vpack.c.b16 %v698, %v697
    %v712 = vpack.c.b16 %v700, %v699
    %v713 = vpack.c.b16 %v702, %v701
    %v714 = vpack.c.b16 %v704, %v703
    %v726 = vsel %vm481, %v642, 0
    %v729 = vsel %vm481, %v644, 0
    %731 = vmatprep.subr.bf16.mxu0 0
    %732 = vmatpush1.bf16.msra.mxu0 %v705
    %733 = vmatprep.subr.bf16.mxu0 0
    %734 = vmatpush1.bf16.msra.mxu0 %v706
    %735 = vmatprep.subr.bf16.mxu0 0
    %736 = vmatpush1.bf16.msra.mxu0 %v707
    %737 = vmatprep.subr.bf16.mxu0 0
    %738 = vmatpush1.bf16.msra.mxu0 %v708
    %739 = vmatprep.subr.bf16.mxu0 0
    %740 = vmatpush1.bf16.msra.mxu0 %v709
    %741 = vmatprep.subr.bf16.mxu0 0
    %742 = vmatpush1.bf16.msra.mxu0 %v710
    %743 = vmatprep.subr.bf16.mxu0 0
    %744 = vmatpush1.bf16.msra.mxu0 %v711
    %745 = vmatprep.subr.bf16.mxu0 0
    %746 = vmatpush1.bf16.msra.mxu0 %v712
    %747 = vmatprep.subr.bf16.mxu0 0
    %748 = vmatpush1.bf16.msra.mxu0 %v713
    %749 = vmatprep.subr.bf16.mxu0 0
    %750 = vmatpush1.bf16.msra.mxu0 %v714
    %751 = vmatprep.subr.bf16.mxu0 0
    %752 = vmatpush1.bf16.msra.mxu0 0
    %753 = vmatprep.subr.bf16.mxu0 0
    %754 = vmatpush1.bf16.msra.mxu0 0
    %755 = vmatprep.subr.bf16.mxu0 0
    %756 = vmatpush1.bf16.msra.mxu0 0
    %757 = vmatprep.subr.bf16.mxu0 0
    %758 = vmatpush1.bf16.msra.mxu0 0
    %759 = vmatprep.subr.bf16.mxu0 0
    %760 = vmatpush1.bf16.msra.mxu0 0
    %761 = vmatprep.subr.bf16.mxu0 0
    %762 = vmatpush1.bf16.msra.mxu0 0
    %763 = vmatprep.mubr.bf16.mxu0 %v726
    %764 = vmatmul.mubr.bf16.gmra.mrb[0].mxu0 %v641
    %v765 = vpop.f32.mrb[0].mxu0
    %v766 = vadd.f32 0.0, %v765
    %v767 = vpop.f32.mrb[0].mxu0
    %v768 = vpop.f32.mrb[0].mxu0
    %v769 = vadd.f32 0.0, %v768
    %v770 = vpop.f32.mrb[0].mxu0
    %771 = vmatprep.mubr.bf16.mxu0 %v729
    %772 = vmatmul.mubr.bf16.gmra.mrb[0].mxu0 %v643
    %v773 = vpop.f32.mrb[0].mxu0
    %v774 = vadd.f32 0.0, %v773
    %v775 = vpop.f32.mrb[0].mxu0
    %v776 = vpop.f32.mrb[0].mxu0
    %v777 = vadd.f32 0.0, %v776
    %v778 = vpop.f32.mrb[0].mxu0
    %779 = vdwg.mxu0
    %v784 = vcombine.high %v766, %v766
    %v786 = vunpack.c.l.s4 1983009808
    %v787 = vunpack.c.0.s8 %v786
    %v788 = vlaneseq
    %v789 = vshrl.u32 %v788, 7
    %v790 = vsub.s32 %v787, %v789
    %v791 = vrot.slane %v766, %v790
    %v793 = vunpack.c.l.s4 1983009808
    %v794 = vunpack.c.0.s8 %v793
    %v795 = vlaneseq
    %v796 = vshrl.u32 %v795, 7
    %v797 = vsub.s32 %v794, %v796
    %v798 = vrot.slane %v784, %v797
    %v799 = vcombine.high %v791, %v791
    %v800 = vcombine.high %v798, %v798
    %v801 = vcombine.high %v769, %v769
    %v803 = vunpack.c.l.s4 1983009808
    %v804 = vunpack.c.0.s8 %v803
    %v805 = vlaneseq
    %v806 = vshrl.u32 %v805, 7
    %v807 = vsub.s32 %v804, %v806
    %v808 = vrot.slane %v769, %v807
    %v810 = vunpack.c.l.s4 1983009808
    %v811 = vunpack.c.0.s8 %v810
    %v812 = vlaneseq
    %v813 = vshrl.u32 %v812, 7
    %v814 = vsub.s32 %v811, %v813
    %v815 = vrot.slane %v801, %v814
    %v816 = vcombine.high %v808, %v808
    %v817 = vcombine.high %v815, %v815
    %v818 = vcombine.high %v774, %v774
    %v820 = vunpack.c.l.s4 1983009808
    %v821 = vunpack.c.0.s8 %v820
    %v822 = vlaneseq
    %v823 = vshrl.u32 %v822, 7
    %v824 = vsub.s32 %v821, %v823
    %v825 = vrot.slane %v774, %v824
    %v827 = vunpack.c.l.s4 1983009808
    %v828 = vunpack.c.0.s8 %v827
    %v829 = vlaneseq
    %v830 = vshrl.u32 %v829, 7
    %v831 = vsub.s32 %v828, %v830
    %v832 = vrot.slane %v818, %v831
    %v833 = vcombine.high %v825, %v825
    %v834 = vcombine.high %v832, %v832
    %v836 = vunpack.c.l.s4 1983009808
    %v837 = vunpack.c.0.s8 %v836
    %v838 = vlaneseq
    %v839 = vshrl.u32 %v838, 7
    %v840 = vsub.s32 %v837, %v839
    %v841 = vrot.slane %v777, %v840
    %v842 = vcombine.high %v841, %v841
    %v857 = vld [vmem:[%s3] sm:$0x1]
    %v859 = vlaneseq
    %v860 = vshrl.u32 %v859, 7
    %v861 = vsub.s32 0, %v860
    %v862 = vrot.slane %v857, %v861
    %v863 = vcombine.high %v862, %v862
    %v865 = vunpack.c.l.s4 1983009808
    %v866 = vunpack.c.0.s8 %v865
    %v867 = vlaneseq
    %v868 = vshrl.u32 %v867, 7
    %v869 = vsub.s32 %v866, %v868
    %v870 = vrot.slane %v862, %v869
    %v872 = vunpack.c.l.s4 1983009808
    %v873 = vunpack.c.0.s8 %v872
    %v874 = vlaneseq
    %v875 = vshrl.u32 %v874, 7
    %v876 = vsub.s32 %v873, %v875
    %v877 = vrot.slane %v863, %v876
    %v878 = vcombine.high %v870, %v870
    %v879 = vcombine.high %v877, %v877
    %v884 = vadd.f32 %v791, %v870
    %v885 = vadd.f32 %v799, %v878
    %v886 = vadd.f32 %v798, %v877
    %v887 = vadd.f32 %v800, %v879
    %v888 = vadd.f32 %v808, %v870
    %v889 = vadd.f32 %v816, %v878
    %v890 = vadd.f32 %v815, %v877
    %v891 = vadd.f32 %v817, %v870
    %v892 = vadd.f32 %v825, %v878
    %v893 = vadd.f32 %v833, %v877
    %v894 = vadd.f32 %v832, %v879
    %v895 = vadd.f32 %v834, %v870
    %v896 = vadd.f32 %v841, %v878
    %v897 = vadd.f32 %v842, %v877
    %v898 = vmax.f32 %v884, 0.0
    %v899 = vmax.f32 %v885, 0.0
    %v900 = vmax.f32 %v886, 0.0
    %v901 = vmax.f32 %v887, 0.0
    %v902 = vmax.f32 %v888, 0.0
    %v903 = vmax.f32 %v889, 0.0
    %v904 = vmax.f32 %v890, 0.0
    %v905 = vmax.f32 %v891, 0.0
    %v906 = vmax.f32 %v892, 0.0
    %v907 = vmax.f32 %v893, 0.0
    %v908 = vmax.f32 %v894, 0.0
    %v909 = vmax.f32 %v895, 0.0
    %v910 = vmax.f32 %v896, 0.0
    %v911 = vmax.f32 %v897, 0.0
    %v912 = vlaneseq
    %v913 = vshrl.u32 %v912, 7
    %v914 = vadd.s32 %v913, 8
    %vm915 = vcmp.ge.s32.totalorder %v34, 0
    %vm916 = vcmp.lt.s32.totalorder %v34, 16
    %vm917 = vmand %vm915, %vm916
    %vm918 = vcmp.lt.s32.totalorder %v913, 14
    %vm919 = vcmp.lt.s32.totalorder %v914, 14
    %vm920 = vmand %vm917, %vm918
    %vm921 = vmand %vm917, %vm919
    %vm922 = vcmp.ge.s32.totalorder %v34, 16
    %vm923 = vcmp.lt.s32.totalorder %v34, 32
    %vm924 = vmand %vm922, %vm923
    %vm925 = vcmp.lt.s32.totalorder %v913, 13
    %vm926 = vcmp.lt.s32.totalorder %v914, 13
    %vm927 = vmand %vm924, %vm925
    %vm928 = vmand %vm924, %vm926
    %vm929 = vmor %vm920, %vm927
    %vm930 = vmor %vm921, %vm928
    %vm931 = vcmp.ge.s32.totalorder %v34, 32
    %vm932 = vcmp.lt.s32.totalorder %v34, 48
    %vm933 = vmand %vm931, %vm932
    %vm934 = vcmp.lt.s32.totalorder %v913, 12
    %vm935 = vcmp.lt.s32.totalorder %v914, 12
    %vm936 = vmand %vm933, %vm934
    %vm937 = vmand %vm933, %vm935
    %vm938 = vmor %vm929, %vm936
    %vm939 = vmor %vm930, %vm937
    %v954 = vcombine.low %v898, %v899
    %v955 = vcombine.low %v900, %v901
    %v957 = vunpack.c.l.s4 1983009808
    %v958 = vunpack.c.0.s8 %v957
    %v959 = vlaneseq
    %v960 = vshrl.u32 %v959, 7
    %v961 = vsub.s32 %v958, %v960
    %v962 = vrot.slane %v954, %v961
    %v964 = vunpack.c.l.s4 1983009808
    %v965 = vunpack.c.0.s8 %v964
    %v966 = vlaneseq
    %v967 = vshrl.u32 %v966, 7
    %v968 = vsub.s32 %v965, %v967
    %v969 = vrot.slane %v955, %v968
    %v970 = vcombine.low %v962, %v969
    %v971 = vcombine.low %v902, %v903
    %v973 = vunpack.c.l.s4 1983009808
    %v974 = vunpack.c.0.s8 %v973
    %v975 = vlaneseq
    %v976 = vshrl.u32 %v975, 7
    %v977 = vsub.s32 %v974, %v976
    %v978 = vrot.slane %v971, %v977
    %v980 = vunpack.c.l.s4 1983009808
    %v981 = vunpack.c.0.s8 %v980
    %v982 = vlaneseq
    %v983 = vshrl.u32 %v982, 7
    %v984 = vsub.s32 %v981, %v983
    %v985 = vrot.slane %v904, %v984
    %v986 = vcombine.low %v978, %v985
    %v987 = vcombine.low %v905, %v906
    %v988 = vcombine.low %v907, %v908
    %v990 = vunpack.c.l.s4 1983009808
    %v991 = vunpack.c.0.s8 %v990
    %v992 = vlaneseq
    %v993 = vshrl.u32 %v992, 7
    %v994 = vsub.s32 %v991, %v993
    %v995 = vrot.slane %v987, %v994
    %v997 = vunpack.c.l.s4 1983009808
    %v998 = vunpack.c.0.s8 %v997
    %v999 = vlaneseq
    %v1000 = vshrl.u32 %v999, 7
    %v1001 = vsub.s32 %v998, %v1000
    %v1002 = vrot.slane %v988, %v1001
    %v1003 = vcombine.low %v995, %v1002
    %v1004 = vcombine.low %v909, %v910
    %v1006 = vunpack.c.l.s4 1983009808
    %v1007 = vunpack.c.0.s8 %v1006
    %v1008 = vlaneseq
    %v1009 = vshrl.u32 %v1008, 7
    %v1010 = vsub.s32 %v1007, %v1009
    %v1011 = vrot.slane %v1004, %v1010
    %v1013 = vunpack.c.l.s4 1983009808
    %v1014 = vunpack.c.0.s8 %v1013
    %v1015 = vlaneseq
    %v1016 = vshrl.u32 %v1015, 7
    %v1017 = vsub.s32 %v1014, %v1016
    %v1018 = vrot.slane %v911, %v1017
    %v1019 = vcombine.low %v1011, %v1018
    %v1024 = vsel %vm938, %v970, -inf
    %v1025 = vsel %vm939, %v986, -inf
    %v1026 = vsel %vm938, %v1003, -inf
    %v1027 = vsel %vm939, %v1019, -inf
    %vm1028 = vcmask 392192
    %v1029 = vsel %vm1028, %v1024, -inf
    %vm1030 = vcmask 390144
    %v1031 = vsel %vm1030, %v1025, -inf
    %v1032 = vmax.f32 %v1029, %v1031
    %v1033 = vrot.slane %v1032, 4
    %v1034 = vmax.f32 %v1032, %v1033
    %v1035 = vrot.slane %v1034, 2
    %v1036 = vmax.f32 %v1034, %v1035
    %v1037 = vrot.slane %v1036, 1
    %v1038 = vmax.f32 %v1036, %v1037
    %v1039 = vsel %vm1028, %v1026, -inf
    %v1040 = vsel %vm1030, %v1027, -inf
    %v1041 = vmax.f32 %v1039, %v1040
    %v1042 = vrot.slane %v1041, 4
    %v1043 = vmax.f32 %v1041, %v1042
    %v1044 = vrot.slane %v1043, 2
    %v1045 = vmax.f32 %v1043, %v1044
    %v1046 = vrot.slane %v1045, 1
    %v1047 = vmax.f32 %v1045, %v1046
    %v1048 = vld [vmem:[%s4] sm:$0x3]
    %vm1049 = vcmp.ge.u32.totalorder %v1048, 2147483648
    %v1050 = vmul.f32 %v1038, 2.0
    %v1051 = vmul.f32 %v1047, 2.0
    %vm1054 = vcmask 1041409
    %v1055 = vsel %vm1054, %v1051, %v1050
    %v1057 = vsel %vm1049, %v1055, 0.0
    %v1058 = vpack.c.bf16 %v1057, %v1057
    %v1059 = vld [vmem:[%s5] sm:$0xf]
    %v1060 = vld [vmem:[%s5 + $0x4] sm:$0xf]
    %v1061 = vld [vmem:[%s5 + $0x8] sm:$0xf]
    %v1062 = vld [vmem:[%s5 + $0xc] sm:$0xf]
    %v1063 = vld [vmem:[%s5 + $0x10] sm:$0xf]
    %v1064 = vld [vmem:[%s5 + $0x14] sm:$0xf]
    %v1065 = vld [vmem:[%s6] sm:$0x1]
    %v1067 = vlaneseq
    %v1068 = vshrl.u32 %v1067, 7
    %v1069 = vsub.s32 0, %v1068
    %v1070 = vrot.slane %v1065, %v1069
    %v1078 = vunpack.c.l.b16 %v1059
    %v1079 = vunpack.c.l.b16 %v1060
    %v1080 = vunpack.c.l.b16 %v1061
    %v1081 = vunpack.c.l.b16 %v1062
    %v1082 = vunpack.c.l.b16 %v1063
    %v1083 = vunpack.c.l.b16 %v1064
    %v1084 = vpack.c.b16 %v1079, %v1078
    %v1085 = vpack.c.b16 %v1081, %v1080
    %v1086 = vpack.c.b16 %v1083, %v1082
    %v1091 = vsel %vm1028, %v1058, 0
    %1093 = vmatprep.subr.bf16.mxu0 0
    %1094 = vmatpush1.bf16.msra.mxu0 %v1084
    %1095 = vmatprep.subr.bf16.mxu0 0
    %1096 = vmatpush1.bf16.msra.mxu0 %v1085
    %1097 = vmatprep.subr.bf16.mxu0 0
    %1098 = vmatpush1.bf16.msra.mxu0 %v1086
    %1099 = vmatprep.subr.bf16.mxu0 0
    %1100 = vmatpush1.bf16.msra.mxu0 0
    %1101 = vmatprep.subr.bf16.mxu0 0
    %1102 = vmatpush1.bf16.msra.mxu0 0
    %1103 = vmatprep.subr.bf16.mxu0 0
    %1104 = vmatpush1.bf16.msra.mxu0 0
    %1105 = vmatprep.subr.bf16.mxu0 0
    %1106 = vmatpush1.bf16.msra.mxu0 0
    %1107 = vmatprep.subr.bf16.mxu0 0
    %1108 = vmatpush1.bf16.msra.mxu0 0
    %1109 = vmatprep.subr.bf16.mxu0 0
    %1110 = vmatpush1.bf16.msra.mxu0 0
    %1111 = vmatprep.subr.bf16.mxu0 0
    %1112 = vmatpush1.bf16.msra.mxu0 0
    %1113 = vmatprep.subr.bf16.mxu0 0
    %1114 = vmatpush1.bf16.msra.mxu0 0
    %1115 = vmatprep.subr.bf16.mxu0 0
    %1116 = vmatpush1.bf16.msra.mxu0 0
    %1117 = vmatprep.subr.bf16.mxu0 0
    %1118 = vmatpush1.bf16.msra.mxu0 0
    %1119 = vmatprep.subr.bf16.mxu0 0
    %1120 = vmatpush1.bf16.msra.mxu0 0
    %1121 = vmatprep.subr.bf16.mxu0 0
    %1122 = vmatpush1.bf16.msra.mxu0 0
    %1123 = vmatprep.subr.bf16.mxu0 0
    %1124 = vmatpush1.bf16.msra.mxu0 0
    %1125 = vmatprep.mubr.bf16.mxu0 0
    %1126 = vmatmul.mubr.bf16.gmra.mrb[0].mxu0 %v1091
    %v1127 = vpop.f32.mrb[0].mxu0
    %v1128 = vadd.f32 %v1070, %v1127
    %v1129 = vpop.f32.mrb[0].mxu0
    %v1130 = vpop.f32.mrb[0].mxu0
    %v1131 = vpop.f32.mrb[0].mxu0
    %1132 = vdwg.mxu0
    %1133 = vst [vmem:[#allocation2] sm:$0x3] %v1128
    // Predicated region
    $region30: #{tpu_custom_call.1} parent=1 // pred_check
      _
    $region31: #{tpu_custom_call.1} parent=1 // pred_check_branch
      %1135 = sbr.rel (0) target = $region33
    $region32: #{tpu_custom_call.1} parent=1 // pred_region
      %s1137 = ssub.s32 32, 32
      %1138 = vsyncadd [#allocation3], %s1137
      %s1140 = sshll.u32 [#allocation2], 4
      %s1141 = int_to_ptr.vmem [resolvable:$true] %s1140
      %1143 = dma.vmem_to_hbm [thread:$0]  %s1141, 32, %s7, [#allocation3]
    $region33: #{tpu_custom_call.1} parent=1 // pred_fallthru
      _
    // Predicated region
    $region34: #{tpu_custom_call.1} parent=1 // pred_check
      _
    $region35: #{tpu_custom_call.1} parent=1 // pred_check_branch
      %1145 = sbr.rel (0) target = $region37
    $region36: #{tpu_custom_call.1} parent=1 // pred_region
      %1146 = dma.done [#allocation3], 32
    $region37: #{tpu_custom_call.1} parent=1 // pred_fallthru
      _
    %1147 = vsyncpa [#allocation3], 1

</llo_original>
